<compile_context>
chip_gen: v7x
topology: tpu7x:2x2x1
jax: 0.10.0
libtpu: 0.0.40
codegen_flags: <defaults>
</compile_context>

<pallas_src>
import jax
import jax.numpy as jnp
from jax.experimental import pallas as pl
from jax.experimental.pallas import tpu as pltpu


def _film_kernel(t_ref, c_ref, wg_ref, wb_ref, bg_ref, bb_ref, gamma_ref, beta_ref):
    # Concat along lanes + SiLU. Recomputed per N-tile: (B, Din) elementwise is
    # negligible next to the weight-tile DMA, and EUP/VPU slots have huge slack.
    x = jnp.concatenate([t_ref[...], c_ref[...]], axis=-1).astype(jnp.float32)
    x = x * (1.0 / (1.0 + jnp.exp(-x)))  # SiLU: exp on EUP, mul/add on VPU

    wg = wg_ref[...].astype(jnp.float32)  # (Din, TN) -> gamma columns of W
    wb = wb_ref[...].astype(jnp.float32)  # (Din, TN) -> beta  columns of W

    g = jnp.dot(x, wg, preferred_element_type=jnp.float32) + bg_ref[...].astype(jnp.float32)
    b = jnp.dot(x, wb, preferred_element_type=jnp.float32) + bb_ref[...].astype(jnp.float32)

    gamma_ref[...] = g.astype(gamma_ref.dtype)
    beta_ref[...] = b.astype(beta_ref.dtype)


def film_with_conds(time_emb, class_emb, w, b, *, tn=512):
    """FiLM conditioning head.

    time_emb:  (B, Dt) float32
    class_emb: (B, Dc) float32
    w:         (Dt+Dc, 2*O) float32  -- transpose of the PyTorch nn.Linear weight
    b:         (2*O,) float32        -- nn.Linear bias
    Returns (gamma, beta), each of shape (B, O, 1), matching the torch module.
    """
    B, Dt = time_emb.shape
    Bc, Dc = class_emb.shape
    assert B == Bc
    Din, O2 = w.shape
    assert Din == Dt + Dc and O2 % 2 == 0
    O = O2 // 2

    tn = min(tn, O)
    assert O % tn == 0, "output_dim must be divisible by the N tile"
    assert tn % 128 == 0 or tn == O, "N tile must be lane-aligned (multiple of 128)"
    n_tiles = O // tn

    dtype = time_emb.dtype
    b2 = b.reshape(1, O2)  # lane-major bias so it tiles as (1, TN) blocks

    # Explicit scoped-VMEM budget: double-buffered blocks + 2x headroom,
    # clamped to [16 MiB, 48 MiB] so it is safe on v5e/v6e (128 MiB) and
    # v7x (64 MiB physical).
    itemsize = 4
    block_bytes = itemsize * (
        2 * B * (Dt + Dc)      # time/class embeddings (x2 buffers)
        + 4 * Din * tn         # two weight views       (x2 buffers each)
        + 4 * tn               # two bias tiles
        + 4 * B * tn           # gamma / beta output tiles
    )
    vmem_limit = int(min(max(2 * block_bytes, 16 * 2**20), 48 * 2**20))

    cost = pl.CostEstimate(
        flops=2 * B * Din * O2 + 4 * B * Din * n_tiles,
        transcendentals=B * Din * n_tiles,
        bytes_accessed=itemsize * (n_tiles * B * Din + Din * O2 + O2 + 2 * B * O),
    )

    gamma, beta = pl.pallas_call(
        _film_kernel,
        out_shape=(
            jax.ShapeDtypeStruct((B, O), dtype),
            jax.ShapeDtypeStruct((B, O), dtype),
        ),
        grid=(n_tiles,),
        in_specs=[
            pl.BlockSpec((B, Dt), lambda n: (0, 0)),              # time_emb (whole, tiny)
            pl.BlockSpec((B, Dc), lambda n: (0, 0)),              # class_emb (whole, tiny)
            pl.BlockSpec((Din, tn), lambda n: (0, n)),            # W columns -> gamma
            pl.BlockSpec((Din, tn), lambda n: (0, n + n_tiles)),  # W columns -> beta
            pl.BlockSpec((1, tn), lambda n: (0, n)),              # bias (gamma half)
            pl.BlockSpec((1, tn), lambda n: (0, n + n_tiles)),    # bias (beta half)
        ],
        out_specs=(
            pl.BlockSpec((B, tn), lambda n: (0, n)),              # gamma, lane-dense store
            pl.BlockSpec((B, tn), lambda n: (0, n)),              # beta, lane-dense store
        ),
        compiler_params=pltpu.CompilerParams(
            dimension_semantics=("parallel",),
            vmem_limit_bytes=vmem_limit,
        ),
        cost_estimate=cost,
    )(time_emb, class_emb, w, w, b2, b2)

    # unsqueeze(-1) as in the reference; chunk already done via the two outputs.
    return gamma[..., None], beta[..., None]


def _reference_film(time_emb, class_emb, w, b):
    # Pure-JAX mirror of the PyTorch module.
    x = jnp.concatenate([time_emb, class_emb], axis=-1)
    x = jax.nn.silu(x)
    y = (x @ w + b)[..., None]            # (B, 2*O, 1)
    o = w.shape[1] // 2
    return y[:, :o], y[:, o:]


if __name__ == "__main__":
    key = jax.random.PRNGKey(0)
    kt, kc, kw, kb = jax.random.split(key, 4)

    B = 8
    time_emb_dim, classes_emb_dim, output_dim = 128, 128, 256

    time_emb = jax.random.normal(kt, (B, time_emb_dim), dtype=jnp.float32)
    class_emb = jax.random.normal(kc, (B, classes_emb_dim), dtype=jnp.float32)
    # Deterministic Linear params; w stored as (in_features, out_features).
    w = 0.02 * jax.random.normal(
        kw, (time_emb_dim + classes_emb_dim, 2 * output_dim), dtype=jnp.float32)
    b = 0.02 * jax.random.normal(kb, (2 * output_dim,), dtype=jnp.float32)

    gamma, beta = film_with_conds(time_emb, class_emb, w, b, tn=128)
    gamma, beta = jax.block_until_ready((gamma, beta))

    ref_gamma, ref_beta = _reference_film(time_emb, class_emb, w, b)
    assert gamma.shape == (B, output_dim, 1)
    assert beta.shape == (B, output_dim, 1)
    assert jnp.allclose(gamma, ref_gamma, atol=1e-4, rtol=1e-4)
    assert jnp.allclose(beta, ref_beta, atol=1e-4, rtol=1e-4)

    print("KERNEL_OK")
</pallas_src>

<mosaic_0001>
module attributes {stable_mosaic.version = 11 : i64} {
  func.func @_film_kernel(%arg0: i32, %arg1: memref<8x128xf32, #tpu.memory_space<vmem>>, %arg2: memref<8x128xf32, #tpu.memory_space<vmem>>, %arg3: memref<256x128xf32, #tpu.memory_space<vmem>>, %arg4: memref<256x128xf32, #tpu.memory_space<vmem>>, %arg5: memref<1x128xf32, #tpu.memory_space<vmem>>, %arg6: memref<1x128xf32, #tpu.memory_space<vmem>>, %arg7: memref<8x128xf32, #tpu.memory_space<vmem>>, %arg8: memref<8x128xf32, #tpu.memory_space<vmem>>) attributes {dimension_semantics = [#tpu.dimension_semantics<parallel>], iteration_bounds = array<i64: 2>, scalar_prefetch = 0 : i64, scratch_operands = 0 : i64, tpu.core_type = #tpu.core_type<tc>, window_params = [{pipeline_mode = #tpu.pipeline_mode<synchronous>, transform_indices = @transform_0, window_bounds = array<i64: 8, 128>}, {pipeline_mode = #tpu.pipeline_mode<synchronous>, transform_indices = @transform_1, window_bounds = array<i64: 8, 128>}, {transform_indices = @transform_2, window_bounds = array<i64: 256, 128>}, {transform_indices = @transform_3, window_bounds = array<i64: 256, 128>}, {transform_indices = @transform_4, window_bounds = array<i64: 1, 128>}, {transform_indices = @transform_5, window_bounds = array<i64: 1, 128>}, {transform_indices = @transform_6, window_bounds = array<i64: 8, 128>}, {transform_indices = @transform_7, window_bounds = array<i64: 8, 128>}]} {
    %c0 = arith.constant 0 : index
    %c0_0 = arith.constant 0 : index
    %0 = vector.load %arg1[%c0, %c0_0] : memref<8x128xf32, #tpu.memory_space<vmem>>, vector<8x128xf32>
    %c0_1 = arith.constant 0 : index
    %c0_2 = arith.constant 0 : index
    %1 = vector.load %arg2[%c0_1, %c0_2] : memref<8x128xf32, #tpu.memory_space<vmem>>, vector<8x128xf32>
    %2 = tpu.concatenate %0, %1 in 1 : vector<8x128xf32>, vector<8x128xf32> -> vector<8x256xf32>
    %cst = arith.constant 0.000000e+00 : f32
    %3 = vector.broadcast %cst : f32 to vector<8x256xf32>
    %4 = arith.subf %3, %2 : vector<8x256xf32>
    %5 = math.exp %4 : vector<8x256xf32>
    %cst_3 = arith.constant 1.000000e+00 : f32
    %6 = vector.broadcast %cst_3 : f32 to vector<8x256xf32>
    %7 = arith.addf %6, %5 : vector<8x256xf32>
    %cst_4 = arith.constant 1.000000e+00 : f32
    %8 = vector.broadcast %cst_4 : f32 to vector<8x256xf32>
    %9 = arith.divf %8, %7 : vector<8x256xf32>
    %10 = arith.mulf %2, %9 : vector<8x256xf32>
    %c0_5 = arith.constant 0 : index
    %c0_6 = arith.constant 0 : index
    %11 = vector.load %arg3[%c0_5, %c0_6] : memref<256x128xf32, #tpu.memory_space<vmem>>, vector<256x128xf32>
    %c0_7 = arith.constant 0 : index
    %c0_8 = arith.constant 0 : index
    %12 = vector.load %arg4[%c0_7, %c0_8] : memref<256x128xf32, #tpu.memory_space<vmem>>, vector<256x128xf32>
    %cst_9 = arith.constant dense<0.000000e+00> : vector<8x128xf32>
    %13 = tpu.matmul %10, %11, %cst_9 {dimension_numbers = #tpu.dot_dimension_numbers<[1], [0], [0], [1], [0, 0, 1, 1], [], []>} : vector<8x256xf32>, vector<256x128xf32>, vector<8x128xf32> -> vector<8x128xf32>
    %c0_10 = arith.constant 0 : index
    %c0_11 = arith.constant 0 : index
    %14 = vector.load %arg5[%c0_10, %c0_11] : memref<1x128xf32, #tpu.memory_space<vmem>>, vector<1x128xf32>
    %15 = vector.broadcast %14 : vector<1x128xf32> to vector<8x128xf32>
    %16 = arith.addf %13, %15 : vector<8x128xf32>
    %cst_12 = arith.constant dense<0.000000e+00> : vector<8x128xf32>
    %17 = tpu.matmul %10, %12, %cst_12 {dimension_numbers = #tpu.dot_dimension_numbers<[1], [0], [0], [1], [0, 0, 1, 1], [], []>} : vector<8x256xf32>, vector<256x128xf32>, vector<8x128xf32> -> vector<8x128xf32>
    %c0_13 = arith.constant 0 : index
    %c0_14 = arith.constant 0 : index
    %18 = vector.load %arg6[%c0_13, %c0_14] : memref<1x128xf32, #tpu.memory_space<vmem>>, vector<1x128xf32>
    %19 = vector.broadcast %18 : vector<1x128xf32> to vector<8x128xf32>
    %20 = arith.addf %17, %19 : vector<8x128xf32>
    %c0_15 = arith.constant 0 : index
    %c0_16 = arith.constant 0 : index
    %21 = vector.load %arg7[%c0_15, %c0_16] : memref<8x128xf32, #tpu.memory_space<vmem>>, vector<8x128xf32>
    tpu.vector_store %arg7[%c0_15, %c0_16], %16 {strides = array<i32>} : memref<8x128xf32, #tpu.memory_space<vmem>>, vector<8x128xf32>,
    %c0_17 = arith.constant 0 : index
    %c0_18 = arith.constant 0 : index
    %22 = vector.load %arg8[%c0_17, %c0_18] : memref<8x128xf32, #tpu.memory_space<vmem>>, vector<8x128xf32>
    tpu.vector_store %arg8[%c0_17, %c0_18], %20 {strides = array<i32>} : memref<8x128xf32, #tpu.memory_space<vmem>>, vector<8x128xf32>,
    return
  }
  func.func @transform_0(%arg0: i32) -> (i32, i32) {
    %c0_i32 = arith.constant 0 : i32
    %c0_i32_0 = arith.constant 0 : i32
    %c0_i32_1 = arith.constant 0 : i32
    return %c0_i32, %c0_i32_0 : i32, i32
  }
  func.func @transform_1(%arg0: i32) -> (i32, i32) {
    %c0_i32 = arith.constant 0 : i32
    %c0_i32_0 = arith.constant 0 : i32
    %c0_i32_1 = arith.constant 0 : i32
    return %c0_i32, %c0_i32_0 : i32, i32
  }
  func.func @transform_2(%arg0: i32) -> (i32, i32) {
    %c0_i32 = arith.constant 0 : i32
    %c0_i32_0 = arith.constant 0 : i32
    return %c0_i32, %arg0 : i32, i32
  }
  func.func @transform_3(%arg0: i32) -> (i32, i32) {
    %c2_i32 = arith.constant 2 : i32
    %0 = arith.addi %arg0, %c2_i32 : i32
    %c0_i32 = arith.constant 0 : i32
    %c0_i32_0 = arith.constant 0 : i32
    return %c0_i32, %0 : i32, i32
  }
  func.func @transform_4(%arg0: i32) -> (i32, i32) {
    %c0_i32 = arith.constant 0 : i32
    %c0_i32_0 = arith.constant 0 : i32
    return %c0_i32, %arg0 : i32, i32
  }
  func.func @transform_5(%arg0: i32) -> (i32, i32) {
    %c2_i32 = arith.constant 2 : i32
    %0 = arith.addi %arg0, %c2_i32 : i32
    %c0_i32 = arith.constant 0 : i32
    %c0_i32_0 = arith.constant 0 : i32
    return %c0_i32, %0 : i32, i32
  }
  func.func @transform_6(%arg0: i32) -> (i32, i32) {
    %c0_i32 = arith.constant 0 : i32
    %c0_i32_0 = arith.constant 0 : i32
    return %c0_i32, %arg0 : i32, i32
  }
  func.func @transform_7(%arg0: i32) -> (i32, i32) {
    %c0_i32 = arith.constant 0 : i32
    %c0_i32_0 = arith.constant 0 : i32
    return %c0_i32, %arg0 : i32, i32
  }
}

</mosaic_0001>

<llo_original>
// kernel: tpu_custom_call.1
$region0: #{tpu_custom_call.1}
  #allocation0 [shape = 'u32[]', space=smem, size = 0x4, offset = 0x4, fixed_abs, tag = 'smem constant byte address 0x4 - core index']
  #allocation1 [shape = 'u32[144,128]{1,0:T(1,128)}', space=vmem, size = 0x12000, scoped, tag = 'internal scratch']
  %s0 = inlined_call_operand.hbm [shape: f32[8,128], index: 0, kind: input, shape index: {}]
  %s1 = inlined_call_operand.hbm [shape: f32[8,128], index: 1, kind: input, shape index: {}]
  %s2 = inlined_call_operand.hbm [shape: f32[256,512], index: 2, kind: input, shape index: {}]
  %s3 = inlined_call_operand.hbm [shape: f32[256,512], index: 3, kind: input, shape index: {}]
  %s4 = inlined_call_operand.vmem [shape: f32[1,512], index: 4, kind: input, shape index: {}]
  %s5 = inlined_call_operand.vmem [shape: f32[1,512], index: 5, kind: input, shape index: {}]
  %s6 = inlined_call_operand.hbm [shape: f32[8,256], index: 6, kind: output, shape index: {0}]
  %s7 = inlined_call_operand.hbm [shape: f32[8,256], index: 7, kind: output, shape index: {1}]
  %8 = xla_tuple %s6, %s7
  %s9 = sld [smem:[#allocation0]]
  $region81: #{tpu_custom_call.1} parent=0
    _
  %s11 = ssub.s32 1, %s9
  %s12 = scalar_select 0, %s11, %s9
  $region1: #{tpu_custom_call.1} parent=0
    #allocation2 [shape = 'u8[4096]{0}', space=vmem, size = 0x1000, scoped, tag = 'input window, operand 0, single buffered']
    #allocation3 [shape = 's32[2]{0}', space=sflag, size = 0x8, scoped, tag = 'scoped memory for tpu_custom_call.1']
    #allocation4 [shape = 's32[2]{0}', space=sflag, size = 0x8, scoped, tag = 'scoped memory for tpu_custom_call.1']
    #allocation5 [shape = 'u8[4096]{0}', space=vmem, size = 0x1000, scoped, tag = 'input window, operand 1, single buffered']
    #allocation6 [shape = 's32[1]{0}', space=sflag, size = 0x4, scoped, tag = 'scoped memory for tpu_custom_call.1']
    #allocation7 [shape = 'u8[262144]{0}', space=vmem, size = 0x40000, scoped, tag = 'input window, operand 2']
    #allocation8 [shape = 'u8[262144]{0}', space=vmem, size = 0x40000, scoped, tag = 'input window, operand 3']
    #allocation9 [shape = 'u8[8192]{0}', space=vmem, size = 0x2000, scoped, tag = 'output window, operand 0']
    #allocation10 [shape = 'u8[8192]{0}', space=vmem, size = 0x2000, scoped, tag = 'output window, operand 1']
    #allocation11 [shape = 's32[2]{0}', space=sflag, size = 0x8, scoped, tag = 'scoped memory for tpu_custom_call.1']
    %13 = vsyncpa [#allocation3], 0
    %14 = vsyncpa [#allocation6], 0
    %15 = vsyncpa [#allocation4], 0
    %s16 = scalar_lea.sflag [#allocation4], 1
    %17 = vsyncpa %s16, 0
    %18 = vsyncpa [#allocation11], 0
    %s19 = scalar_lea.sflag [#allocation11], 1
    %20 = vsyncpa %s19, 0
    loop: start=0, step=1, limit=4
    $region2: #{tpu_custom_call.1} parent=1 // loop_pre_header
      _
    $region3: #{tpu_custom_call.1} parent=1 // loop_header
      %s22 = sphi 0, %s26
      %p23 = scmp.ge.s32.totalorder %s22, 4
      %s30 = sphi 0, %s30
      %s32 = sphi 0, %s30
      %s33 = sphi 0, %s32
      %s47 = sphi 0, %s33
      %s51 = sphi 0, %s51
      %s53 = sphi 0, %s51
      %s54 = sphi 0, %s53
      %s68 = sphi 0, %s54
      %s74 = sphi 0, %s76
      %s77 = sphi 0, %s74
      %s78 = sphi 0, %s77
      %s94 = sphi 0, %s78
      %s102 = sphi 0, %s104
      %s105 = sphi 0, %s102
      %s106 = sphi 0, %s105
      %s122 = sphi 0, %s106
      %s128 = sphi 0, %s130
      %s131 = sphi 0, %s128
      %s132 = sphi 0, %s131
      %s148 = sphi 0, %s132
      %s156 = sphi 0, %s158
      %s159 = sphi 0, %s156
      %s160 = sphi 0, %s159
      %s176 = sphi 0, %s160
      %s182 = sphi 0, %s184
      %s185 = sphi 0, %s182
      %s186 = sphi 0, %s185
      %s202 = sphi 0, %s186
      %s208 = sphi 0, %s210
      %s211 = sphi 0, %s208
      %s212 = sphi 0, %s211
      %s228 = sphi 0, %s212
    $region4: #{tpu_custom_call.1} parent=1 // loop_header_branch
      %25 = sbr.rel (%p23) target = $region8
    $region5: #{tpu_custom_call.1} parent=1 // loop_body
      %s27 = ssub.s32 %s22, 1
      %s28 = ssub.s32 %s22, 2
      %s29 = sadd.s32 %s22, 1
      %s31 = sadd.s32 %s30, 1
      %p34 = scmp.eq.s32.totalorder %s22, 1
      %p35 = scmp.ne.s32.totalorder %s30, %s32
      %p36 = scmp.eq.s32.totalorder %s22, 0
      %p37 = por %p35, %p36
      %p38 = scmp.ne.s32.totalorder %s30, %s32
      %p39 = scmp.eq.s32.totalorder %s27, 1
      %p40 = por %p38, %p39
      %p41 = scmp.ne.s32.totalorder %s32, %s33
      %p42 = scmp.eq.s32.totalorder %s27, 0
      %p43 = por %p41, %p42
      %p44 = scmp.ne.s32.totalorder %s32, %s33
      %p45 = scmp.eq.s32.totalorder %s28, 1
      %p46 = por %p44, %p45
      %p48 = scmp.ne.s32.totalorder %s33, %s47
      %p49 = scmp.eq.s32.totalorder %s28, 0
      %p50 = por %p48, %p49
      %s52 = sadd.s32 %s51, 1
      %p55 = scmp.eq.s32.totalorder %s22, 1
      %p56 = scmp.ne.s32.totalorder %s51, %s53
      %p57 = scmp.eq.s32.totalorder %s22, 0
      %p58 = por %p56, %p57
      %p59 = scmp.ne.s32.totalorder %s51, %s53
      %p60 = scmp.eq.s32.totalorder %s27, 1
      %p61 = por %p59, %p60
      %p62 = scmp.ne.s32.totalorder %s53, %s54
      %p63 = scmp.eq.s32.totalorder %s27, 0
      %p64 = por %p62, %p63
      %p65 = scmp.ne.s32.totalorder %s53, %s54
      %p66 = scmp.eq.s32.totalorder %s28, 1
      %p67 = por %p65, %p66
      %p69 = scmp.ne.s32.totalorder %s54, %s68
      %p70 = scmp.eq.s32.totalorder %s28, 0
      %p71 = por %p69, %p70
      %s72 = ssub.s32 %s22, %s29
      %p73 = scmp.eq.s32.totalorder %s72, 0
      %s75 = sadd.s32 %s74, 1
      %s76 = scalar_select %p73, %s74, %s75
      %p79 = pneg %p73
      %p80 = scmp.eq.s32.totalorder %s22, 1
      %p81 = por %p79, %p80
      %p82 = scmp.ne.s32.totalorder %s74, %s77
      %p83 = scmp.eq.s32.totalorder %s22, 0
      %p84 = por %p82, %p83
      %p85 = scmp.ne.s32.totalorder %s74, %s77
      %p86 = scmp.eq.s32.totalorder %s27, 1
      %p87 = por %p85, %p86
      %p88 = scmp.ne.s32.totalorder %s77, %s78
      %p89 = scmp.eq.s32.totalorder %s27, 0
      %p90 = por %p88, %p89
      %p91 = scmp.ne.s32.totalorder %s77, %s78
      %p92 = scmp.eq.s32.totalorder %s28, 1
      %p93 = por %p91, %p92
      %p95 = scmp.ne.s32.totalorder %s78, %s94
      %p96 = scmp.eq.s32.totalorder %s28, 0
      %p97 = por %p95, %p96
      %s98 = sadd.s32 %s22, 2
      %s99 = sadd.s32 %s29, 2
      %s100 = ssub.s32 %s98, %s99
      %p101 = scmp.eq.s32.totalorder %s100, 0
      %s103 = sadd.s32 %s102, 1
      %s104 = scalar_select %p101, %s102, %s103
      %p107 = pneg %p101
      %p108 = scmp.eq.s32.totalorder %s22, 1
      %p109 = por %p107, %p108
      %p110 = scmp.ne.s32.totalorder %s102, %s105
      %p111 = scmp.eq.s32.totalorder %s22, 0
      %p112 = por %p110, %p111
      %p113 = scmp.ne.s32.totalorder %s102, %s105
      %p114 = scmp.eq.s32.totalorder %s27, 1
      %p115 = por %p113, %p114
      %p116 = scmp.ne.s32.totalorder %s105, %s106
      %p117 = scmp.eq.s32.totalorder %s27, 0
      %p118 = por %p116, %p117
      %p119 = scmp.ne.s32.totalorder %s105, %s106
      %p120 = scmp.eq.s32.totalorder %s28, 1
      %p121 = por %p119, %p120
      %p123 = scmp.ne.s32.totalorder %s106, %s122
      %p124 = scmp.eq.s32.totalorder %s28, 0
      %p125 = por %p123, %p124
      %s126 = ssub.s32 %s22, %s29
      %p127 = scmp.eq.s32.totalorder %s126, 0
      %s129 = sadd.s32 %s128, 1
      %s130 = scalar_select %p127, %s128, %s129
      %p133 = pneg %p127
      %p134 = scmp.eq.s32.totalorder %s22, 1
      %p135 = por %p133, %p134
      %p136 = scmp.ne.s32.totalorder %s128, %s131
      %p137 = scmp.eq.s32.totalorder %s22, 0
      %p138 = por %p136, %p137
      %p139 = scmp.ne.s32.totalorder %s128, %s131
      %p140 = scmp.eq.s32.totalorder %s27, 1
      %p141 = por %p139, %p140
      %p142 = scmp.ne.s32.totalorder %s131, %s132
      %p143 = scmp.eq.s32.totalorder %s27, 0
      %p144 = por %p142, %p143
      %p145 = scmp.ne.s32.totalorder %s131, %s132
      %p146 = scmp.eq.s32.totalorder %s28, 1
      %p147 = por %p145, %p146
      %p149 = scmp.ne.s32.totalorder %s132, %s148
      %p150 = scmp.eq.s32.totalorder %s28, 0
      %p151 = por %p149, %p150
      %s152 = sadd.s32 %s22, 2
      %s153 = sadd.s32 %s29, 2
      %s154 = ssub.s32 %s152, %s153
      %p155 = scmp.eq.s32.totalorder %s154, 0
      %s157 = sadd.s32 %s156, 1
      %s158 = scalar_select %p155, %s156, %s157
      %p161 = pneg %p155
      %p162 = scmp.eq.s32.totalorder %s22, 1
      %p163 = por %p161, %p162
      %p164 = scmp.ne.s32.totalorder %s156, %s159
      %p165 = scmp.eq.s32.totalorder %s22, 0
      %p166 = por %p164, %p165
      %p167 = scmp.ne.s32.totalorder %s156, %s159
      %p168 = scmp.eq.s32.totalorder %s27, 1
      %p169 = por %p167, %p168
      %p170 = scmp.ne.s32.totalorder %s159, %s160
      %p171 = scmp.eq.s32.totalorder %s27, 0
      %p172 = por %p170, %p171
      %p173 = scmp.ne.s32.totalorder %s159, %s160
      %p174 = scmp.eq.s32.totalorder %s28, 1
      %p175 = por %p173, %p174
      %p177 = scmp.ne.s32.totalorder %s160, %s176
      %p178 = scmp.eq.s32.totalorder %s28, 0
      %p179 = por %p177, %p178
      %s180 = ssub.s32 %s22, %s29
      %p181 = scmp.eq.s32.totalorder %s180, 0
      %s183 = sadd.s32 %s182, 1
      %s184 = scalar_select %p181, %s182, %s183
      %p187 = pneg %p181
      %p188 = scmp.eq.s32.totalorder %s22, 1
      %p189 = por %p187, %p188
      %p190 = scmp.ne.s32.totalorder %s182, %s185
      %p191 = scmp.eq.s32.totalorder %s22, 0
      %p192 = por %p190, %p191
      %p193 = scmp.ne.s32.totalorder %s182, %s185
      %p194 = scmp.eq.s32.totalorder %s27, 1
      %p195 = por %p193, %p194
      %p196 = scmp.ne.s32.totalorder %s185, %s186
      %p197 = scmp.eq.s32.totalorder %s27, 0
      %p198 = por %p196, %p197
      %p199 = scmp.ne.s32.totalorder %s185, %s186
      %p200 = scmp.eq.s32.totalorder %s28, 1
      %p201 = por %p199, %p200
      %p203 = scmp.ne.s32.totalorder %s186, %s202
      %p204 = scmp.eq.s32.totalorder %s28, 0
      %p205 = por %p203, %p204
      %s206 = ssub.s32 %s22, %s29
      %p207 = scmp.eq.s32.totalorder %s206, 0
      %s209 = sadd.s32 %s208, 1
      %s210 = scalar_select %p207, %s208, %s209
      %p213 = pneg %p207
      %p214 = scmp.eq.s32.totalorder %s22, 1
      %p215 = por %p213, %p214
      %p216 = scmp.ne.s32.totalorder %s208, %s211
      %p217 = scmp.eq.s32.totalorder %s22, 0
      %p218 = por %p216, %p217
      %p219 = scmp.ne.s32.totalorder %s208, %s211
      %p220 = scmp.eq.s32.totalorder %s27, 1
      %p221 = por %p219, %p220
      %p222 = scmp.ne.s32.totalorder %s211, %s212
      %p223 = scmp.eq.s32.totalorder %s27, 0
      %p224 = por %p222, %p223
      %p225 = scmp.ne.s32.totalorder %s211, %s212
      %p226 = scmp.eq.s32.totalorder %s28, 1
      %p227 = por %p225, %p226
      %p229 = scmp.ne.s32.totalorder %s212, %s228
      %p230 = scmp.eq.s32.totalorder %s28, 0
      %p231 = por %p229, %p230
      %p232 = scmp.le.s32.totalorder 1, %s22
      %p233 = scmp.lt.s32.totalorder %s22, 3
      %p234 = pnand %p232, %p233
      %p235 = pneg %p234
      // Predicated region
      $region9: #{tpu_custom_call.1} parent=5 // pred_check
        _
      $region10: #{tpu_custom_call.1} parent=5 // pred_check_branch
        %237 = sbr.rel (%p234) target = $region12
      $region11: #{tpu_custom_call.1} parent=5 // pred_region
        %s238 = ssub.s32 %s22, 1
        // Predicated region
        $region13: #{tpu_custom_call.1} parent=11 // pred_check
          %p239 = pneg %p43
        $region14: #{tpu_custom_call.1} parent=11 // pred_check_branch
          %241 = sbr.rel (%p239) target = $region16
        $region15: #{tpu_custom_call.1} parent=11 // pred_region
          %s243 = ssub.s32 128, 128
          %244 = vsyncadd [#allocation3], %s243
          %s246 = sshll.u32 [#allocation2], 4
          %s247 = int_to_ptr.vmem [resolvable:$true] %s246
          %249 = dma.hbm_to_vmem [thread:$0]  %s0, 128, %s247, [#allocation3]
        $region16: #{tpu_custom_call.1} parent=11 // pred_fallthru
          _
        // Predicated region
        $region17: #{tpu_custom_call.1} parent=11 // pred_check
          %p250 = pneg %p64
        $region18: #{tpu_custom_call.1} parent=11 // pred_check_branch
          %252 = sbr.rel (%p250) target = $region20
        $region19: #{tpu_custom_call.1} parent=11 // pred_region
          %s254 = ssub.s32 128, 128
          %255 = vsyncadd [#allocation6], %s254
          %s257 = sshll.u32 [#allocation5], 4
          %s258 = int_to_ptr.vmem [resolvable:$true] %s257
          %260 = dma.hbm_to_vmem [thread:$0]  %s1, 128, %s258, [#allocation6]
        $region20: #{tpu_custom_call.1} parent=11 // pred_fallthru
          _
      $region12: #{tpu_custom_call.1} parent=5 // pred_fallthru
        _
      %p261 = scmp.lt.s32.totalorder %s22, 2
      // Predicated region
      $region21: #{tpu_custom_call.1} parent=5 // pred_check
        %p262 = pneg %p261
      $region22: #{tpu_custom_call.1} parent=5 // pred_check_branch
        %264 = sbr.rel (%p262) target = $region24
      $region23: #{tpu_custom_call.1} parent=5 // pred_region
        // Predicated region
        $region25: #{tpu_custom_call.1} parent=23 // pred_check
          %p265 = pneg %p84
        $region26: #{tpu_custom_call.1} parent=23 // pred_check_branch
          %267 = sbr.rel (%p265) target = $region28
        $region27: #{tpu_custom_call.1} parent=23 // pred_region
          %s268 = sand.u32 %s22, 1
          %s269 = scalar_lea.sflag [#allocation3], %s268
          %s270 = sand.u32 %s74, 1
          %s271 = smul.addr %s270, 256
          %s272 = scalar_lea.vmem [#allocation7], %s271
          %s274 = ssub.s32 4096, 4096
          %275 = vsyncadd %s269, %s274
          %s276 = smul.addr %s22, 128
          %s277 = scalar_lea.hbm %s2, %s276
          %s278 = sshll.u32 %s272, 4
          %s279 = int_to_ptr.vmem [resolvable:$true] %s278
          %284 = dma.hbm_to_vmem [thread:$0]  %s277, 4096, %s279, %s269, 512, 128, 8
        $region28: #{tpu_custom_call.1} parent=23 // pred_fallthru
          _
        // Predicated region
        $region29: #{tpu_custom_call.1} parent=23 // pred_check
          %p285 = pneg %p112
        $region30: #{tpu_custom_call.1} parent=23 // pred_check_branch
          %287 = sbr.rel (%p285) target = $region32
        $region31: #{tpu_custom_call.1} parent=23 // pred_region
          %s288 = sand.u32 %s22, 1
          %s289 = scalar_lea.sflag [#allocation3], %s288
          %s290 = sand.u32 %s102, 1
          %s291 = smul.addr %s290, 256
          %s292 = scalar_lea.vmem [#allocation8], %s291
          %s293 = sadd.s32 %s22, 2
          %s295 = ssub.s32 4096, 4096
          %296 = vsyncadd %s289, %s295
          %s297 = smul.addr %s293, 128
          %s298 = scalar_lea.hbm %s3, %s297
          %s299 = sshll.u32 %s292, 4
          %s300 = int_to_ptr.vmem [resolvable:$true] %s299
          %305 = dma.hbm_to_vmem [thread:$0]  %s298, 4096, %s300, %s289, 512, 128, 8
        $region32: #{tpu_custom_call.1} parent=23 // pred_fallthru
          _
        // Predicated region
        $region33: #{tpu_custom_call.1} parent=23 // pred_check
          %p306 = pneg %p138
        $region34: #{tpu_custom_call.1} parent=23 // pred_check_branch
          %308 = sbr.rel (%p306) target = $region36
        $region35: #{tpu_custom_call.1} parent=23 // pred_region
          %p309 = scmp.lt.s32.totalorder %s22, 3
          %s310 = scalar_select %p309, %s22, 3
          %s311 = scalar_lea.vmem %s4, %s310
        $region36: #{tpu_custom_call.1} parent=23 // pred_fallthru
          _
        // Predicated region
        $region37: #{tpu_custom_call.1} parent=23 // pred_check
          %p312 = pneg %p166
        $region38: #{tpu_custom_call.1} parent=23 // pred_check_branch
          %314 = sbr.rel (%p312) target = $region40
        $region39: #{tpu_custom_call.1} parent=23 // pred_region
          %s315 = sadd.s32 %s22, 2
          %p316 = scmp.lt.s32.totalorder %s315, 3
          %s317 = scalar_select %p316, %s315, 3
          %s318 = scalar_lea.vmem %s5, %s317
          %s319 = sadd.s32 %s22, 2
        $region40: #{tpu_custom_call.1} parent=23 // pred_fallthru
          _
      $region24: #{tpu_custom_call.1} parent=5 // pred_fallthru
        _
      %p320 = scmp.le.s32.totalorder 1, %s22
      %p321 = scmp.lt.s32.totalorder %s22, 3
      %p322 = pnand %p320, %p321
      %p323 = pneg %p322
      // Predicated region
      $region41: #{tpu_custom_call.1} parent=5 // pred_check
        _
      $region42: #{tpu_custom_call.1} parent=5 // pred_check_branch
        %325 = sbr.rel (%p322) target = $region44
      $region43: #{tpu_custom_call.1} parent=5 // pred_region
        %s326 = ssub.s32 %s22, 1
        // Predicated region
        $region45: #{tpu_custom_call.1} parent=43 // pred_check
          %p327 = pneg %p43
        $region46: #{tpu_custom_call.1} parent=43 // pred_check_branch
          %329 = sbr.rel (%p327) target = $region48
        $region47: #{tpu_custom_call.1} parent=43 // pred_region
          %330 = dma.done [#allocation3], 128
        $region48: #{tpu_custom_call.1} parent=43 // pred_fallthru
          _
        // Predicated region
        $region49: #{tpu_custom_call.1} parent=43 // pred_check
          %p331 = pneg %p64
        $region50: #{tpu_custom_call.1} parent=43 // pred_check_branch
          %333 = sbr.rel (%p331) target = $region52
        $region51: #{tpu_custom_call.1} parent=43 // pred_region
          %334 = dma.done [#allocation6], 128
        $region52: #{tpu_custom_call.1} parent=43 // pred_fallthru
          _
        %s335 = sand.u32 %s27, 1
        %s336 = scalar_lea.sflag [#allocation3], %s335
        %s337 = sand.u32 %s77, 1
        %s338 = smul.addr %s337, 256
        %s339 = scalar_lea.vmem [#allocation7], %s338
        // Predicated region
        $region53: #{tpu_custom_call.1} parent=43 // pred_check
          %p340 = pneg %p90
        $region54: #{tpu_custom_call.1} parent=43 // pred_check_branch
          %342 = sbr.rel (%p340) target = $region56
        $region55: #{tpu_custom_call.1} parent=43 // pred_region
          %343 = dma.done %s336, 4096
        $region56: #{tpu_custom_call.1} parent=43 // pred_fallthru
          _
        %s344 = sand.u32 %s27, 1
        %s345 = scalar_lea.sflag [#allocation3], %s344
        %s346 = sand.u32 %s105, 1
        %s347 = smul.addr %s346, 256
        %s348 = scalar_lea.vmem [#allocation8], %s347
        // Predicated region
        $region57: #{tpu_custom_call.1} parent=43 // pred_check
          %p349 = pneg %p118
        $region58: #{tpu_custom_call.1} parent=43 // pred_check_branch
          %351 = sbr.rel (%p349) target = $region60
        $region59: #{tpu_custom_call.1} parent=43 // pred_region
          %352 = dma.done %s345, 4096
        $region60: #{tpu_custom_call.1} parent=43 // pred_fallthru
          _
        %p353 = pneg %p43
        %p354 = pneg %p40
        %p355 = pneg %p64
        %p356 = pneg %p61
        %s357 = sand.u32 %s27, 1
        %s358 = scalar_lea.sflag [#allocation3], %s357
        %s359 = sand.u32 %s77, 1
        %s360 = smul.addr %s359, 256
        %s361 = scalar_lea.vmem [#allocation7], %s360
        %p362 = pneg %p90
        %p363 = pneg %p87
        %s364 = sand.u32 %s27, 1
        %s365 = scalar_lea.sflag [#allocation3], %s364
        %s366 = sand.u32 %s105, 1
        %s367 = smul.addr %s366, 256
        %s368 = scalar_lea.vmem [#allocation8], %s367
        %p369 = pneg %p118
        %p370 = pneg %p115
        %p371 = scmp.lt.s32.totalorder %s27, 3
        %s372 = scalar_select %p371, %s27, 3
        %s373 = scalar_lea.vmem %s4, %s372
        %p374 = pneg %p144
        %p375 = pneg %p141
        %s376 = sadd.s32 %s27, 2
        %p377 = scmp.lt.s32.totalorder %s376, 3
        %s378 = scalar_select %p377, %s376, 3
        %s379 = scalar_lea.vmem %s5, %s378
        %p380 = pneg %p172
        %p381 = pneg %p169
        %p382 = pneg %p198
        %p383 = pneg %p195
        %s384 = sand.u32 %s185, 1
        %s385 = scalar_lea.sflag [#allocation4], %s384
        %s386 = sand.u32 %s185, 1
        %s387 = smul.addr %s386, 8
        %s388 = scalar_lea.vmem [#allocation9], %s387
        %p389 = pneg %p224
        %p390 = pneg %p221
        %s391 = sand.u32 %s211, 1
        %s392 = scalar_lea.sflag [#allocation11], %s391
        %s393 = sand.u32 %s211, 1
        %s394 = smul.addr %s393, 8
        %s395 = scalar_lea.vmem [#allocation10], %s394
        %s396 = sadd.s32 %s27, 2
        %p397 = scmp.lt.s32.totalorder %s27, 3
        %s398 = scalar_select %p397, %s27, 3
        %s399 = scalar_lea.vmem %s4, %s398
        %s400 = sadd.s32 %s27, 2
        %p401 = scmp.lt.s32.totalorder %s400, 3
        %s402 = scalar_select %p401, %s400, 3
        %s403 = scalar_lea.vmem %s5, %s402
        %s404 = sadd.s32 %s27, 2
        %v405 = vld [vmem:[#allocation2] sm:$0xff]
        %v406 = vld [vmem:[#allocation5] sm:$0xff]
        %v407 = vsub.f32 0.0, %v405
        %v408 = vsub.f32 0.0, %v406
        %v409 = vmul.f32 %v407, 1.442695
        %v410 = vpow.pop %v409
        %v411 = vmul.f32 %v408, 1.442695
        %v412 = vpow.pop %v411
        %v413 = vadd.f32 %v410, 1.0
        %v414 = vadd.f32 %v412, 1.0
        %v415 = vrcp.pop %v413
        %v416 = vmul.f32 1.0, %v415
        %v417 = vrcp.pop %v414
        %v418 = vmul.f32 1.0, %v417
        %v419 = vmul.f32 %v405, %v416
        %v420 = vmul.f32 %v406, %v418
        %v421 = vld [vmem:[%s339] sm:$0xff]
        %v422 = vld [vmem:[%s339 + $0x8] sm:$0xff]
        %v423 = vld [vmem:[%s339 + $0x10] sm:$0xff]
        %v424 = vld [vmem:[%s339 + $0x18] sm:$0xff]
        %v425 = vld [vmem:[%s339 + $0x20] sm:$0xff]
        %v426 = vld [vmem:[%s339 + $0x28] sm:$0xff]
        %v427 = vld [vmem:[%s339 + $0x30] sm:$0xff]
        %v428 = vld [vmem:[%s339 + $0x38] sm:$0xff]
        %v429 = vld [vmem:[%s339 + $0x40] sm:$0xff]
        %v430 = vld [vmem:[%s339 + $0x48] sm:$0xff]
        %v431 = vld [vmem:[%s339 + $0x50] sm:$0xff]
        %v432 = vld [vmem:[%s339 + $0x58] sm:$0xff]
        %v433 = vld [vmem:[%s339 + $0x60] sm:$0xff]
        %v434 = vld [vmem:[%s339 + $0x68] sm:$0xff]
        %v435 = vld [vmem:[%s339 + $0x70] sm:$0xff]
        %v436 = vld [vmem:[%s339 + $0x78] sm:$0xff]
        %v437 = vld [vmem:[%s339 + $0x80] sm:$0xff]
        %v438 = vld [vmem:[%s339 + $0x88] sm:$0xff]
        %v439 = vld [vmem:[%s339 + $0x90] sm:$0xff]
        %v440 = vld [vmem:[%s339 + $0x98] sm:$0xff]
        %v441 = vld [vmem:[%s339 + $0xa0] sm:$0xff]
        %v442 = vld [vmem:[%s339 + $0xa8] sm:$0xff]
        %v443 = vld [vmem:[%s339 + $0xb0] sm:$0xff]
        %v444 = vld [vmem:[%s339 + $0xb8] sm:$0xff]
        %v445 = vld [vmem:[%s339 + $0xc0] sm:$0xff]
        %v446 = vld [vmem:[%s339 + $0xc8] sm:$0xff]
        %v447 = vld [vmem:[%s339 + $0xd0] sm:$0xff]
        %v448 = vld [vmem:[%s339 + $0xd8] sm:$0xff]
        %v449 = vld [vmem:[%s339 + $0xe0] sm:$0xff]
        %v450 = vld [vmem:[%s339 + $0xe8] sm:$0xff]
        %v451 = vld [vmem:[%s339 + $0xf0] sm:$0xff]
        %v452 = vld [vmem:[%s339 + $0xf8] sm:$0xff]
        %v453 = vld [vmem:[%s348] sm:$0xff]
        %v454 = vld [vmem:[%s348 + $0x8] sm:$0xff]
        %v455 = vld [vmem:[%s348 + $0x10] sm:$0xff]
        %v456 = vld [vmem:[%s348 + $0x18] sm:$0xff]
        %v457 = vld [vmem:[%s348 + $0x20] sm:$0xff]
        %v458 = vld [vmem:[%s348 + $0x28] sm:$0xff]
        %v459 = vld [vmem:[%s348 + $0x30] sm:$0xff]
        %v460 = vld [vmem:[%s348 + $0x38] sm:$0xff]
        %v461 = vld [vmem:[%s348 + $0x40] sm:$0xff]
        %v462 = vld [vmem:[%s348 + $0x48] sm:$0xff]
        %v463 = vld [vmem:[%s348 + $0x50] sm:$0xff]
        %v464 = vld [vmem:[%s348 + $0x58] sm:$0xff]
        %v465 = vld [vmem:[%s348 + $0x60] sm:$0xff]
        %v466 = vld [vmem:[%s348 + $0x68] sm:$0xff]
        %v467 = vld [vmem:[%s348 + $0x70] sm:$0xff]
        %v468 = vld [vmem:[%s348 + $0x78] sm:$0xff]
        %v469 = vld [vmem:[%s348 + $0x80] sm:$0xff]
        %v470 = vld [vmem:[%s348 + $0x88] sm:$0xff]
        %v471 = vld [vmem:[%s348 + $0x90] sm:$0xff]
        %v472 = vld [vmem:[%s348 + $0x98] sm:$0xff]
        %v473 = vld [vmem:[%s348 + $0xa0] sm:$0xff]
        %v474 = vld [vmem:[%s348 + $0xa8] sm:$0xff]
        %v475 = vld [vmem:[%s348 + $0xb0] sm:$0xff]
        %v476 = vld [vmem:[%s348 + $0xb8] sm:$0xff]
        %v477 = vld [vmem:[%s348 + $0xc0] sm:$0xff]
        %v478 = vld [vmem:[%s348 + $0xc8] sm:$0xff]
        %v479 = vld [vmem:[%s348 + $0xd0] sm:$0xff]
        %v480 = vld [vmem:[%s348 + $0xd8] sm:$0xff]
        %v481 = vld [vmem:[%s348 + $0xe0] sm:$0xff]
        %v482 = vld [vmem:[%s348 + $0xe8] sm:$0xff]
        %v483 = vld [vmem:[%s348 + $0xf0] sm:$0xff]
        %v484 = vld [vmem:[%s348 + $0xf8] sm:$0xff]
        %v485 = vld [vmem:[%s399] sm:$0x1]
        %v487 = vlaneseq
        %v488 = vshrl.u32 %v487, 7
        %v489 = vsub.s32 0, %v488
        %v490 = vrot.slane %v485, %v489
        %492 = vmatprep.subr.mxu0 0.0
        %493 = vmatpush1.msra.mxu0 %v421
        %494 = vmatprep.subr.mxu0 0.0
        %495 = vmatpush1.msra.mxu0 %v422
        %496 = vmatprep.subr.mxu0 0.0
        %497 = vmatpush1.msra.mxu0 %v423
        %498 = vmatprep.subr.mxu0 0.0
        %499 = vmatpush1.msra.mxu0 %v424
        %500 = vmatprep.subr.mxu0 0.0
        %501 = vmatpush1.msra.mxu0 %v425
        %502 = vmatprep.subr.mxu0 0.0
        %503 = vmatpush1.msra.mxu0 %v426
        %504 = vmatprep.subr.mxu0 0.0
        %505 = vmatpush1.msra.mxu0 %v427
        %506 = vmatprep.subr.mxu0 0.0
        %507 = vmatpush1.msra.mxu0 %v428
        %508 = vmatprep.subr.mxu0 0.0
        %509 = vmatpush1.msra.mxu0 %v429
        %510 = vmatprep.subr.mxu0 0.0
        %511 = vmatpush1.msra.mxu0 %v430
        %512 = vmatprep.subr.mxu0 0.0
        %513 = vmatpush1.msra.mxu0 %v431
        %514 = vmatprep.subr.mxu0 0.0
        %515 = vmatpush1.msra.mxu0 %v432
        %516 = vmatprep.subr.mxu0 0.0
        %517 = vmatpush1.msra.mxu0 %v433
        %518 = vmatprep.subr.mxu0 0.0
        %519 = vmatpush1.msra.mxu0 %v434
        %520 = vmatprep.subr.mxu0 0.0
        %521 = vmatpush1.msra.mxu0 %v435
        %522 = vmatprep.subr.mxu0 0.0
        %523 = vmatpush1.msra.mxu0 %v436
        %524 = vmatprep.subr.mxu0 0.0
        %525 = vmatpush1.msra.mxu0 %v437
        %526 = vmatprep.subr.mxu0 0.0
        %527 = vmatpush1.msra.mxu0 %v438
        %528 = vmatprep.subr.mxu0 0.0
        %529 = vmatpush1.msra.mxu0 %v439
        %530 = vmatprep.subr.mxu0 0.0
        %531 = vmatpush1.msra.mxu0 %v440
        %532 = vmatprep.subr.mxu0 0.0
        %533 = vmatpush1.msra.mxu0 %v441
        %534 = vmatprep.subr.mxu0 0.0
        %535 = vmatpush1.msra.mxu0 %v442
        %536 = vmatprep.subr.mxu0 0.0
        %537 = vmatpush1.msra.mxu0 %v443
        %538 = vmatprep.subr.mxu0 0.0
        %539 = vmatpush1.msra.mxu0 %v444
        %540 = vmatprep.subr.mxu0 0.0
        %541 = vmatpush1.msra.mxu0 %v445
        %542 = vmatprep.subr.mxu0 0.0
        %543 = vmatpush1.msra.mxu0 %v446
        %544 = vmatprep.subr.mxu0 0.0
        %545 = vmatpush1.msra.mxu0 %v447
        %546 = vmatprep.subr.mxu0 0.0
        %547 = vmatpush1.msra.mxu0 %v448
        %548 = vmatprep.subr.mxu0 0.0
        %549 = vmatpush1.msra.mxu0 %v449
        %550 = vmatprep.subr.mxu0 0.0
        %551 = vmatpush1.msra.mxu0 %v450
        %552 = vmatprep.subr.mxu0 0.0
        %553 = vmatpush1.msra.mxu0 %v451
        %554 = vmatprep.subr.mxu0 0.0
        %555 = vmatpush1.msra.mxu0 %v452
        %556 = vmatprep.mubr.f32.mxu0 %v420
        %557 = vmatmul.mubr.f32.gmra.mrb[0].mxu0 %v419
        %v558 = vpop.f32.mrb[0].mxu0
        %v559 = vadd.f32 %v490, %v558
        %v560 = vpop.f32.mrb[0].mxu0
        %561 = vdwg.mxu0
        %v562 = vld [vmem:[%s403] sm:$0x1]
        %v564 = vlaneseq
        %v565 = vshrl.u32 %v564, 7
        %v566 = vsub.s32 0, %v565
        %v567 = vrot.slane %v562, %v566
        %569 = vmatprep.subr.mxu0 0.0
        %570 = vmatpush1.msra.mxu0 %v453
        %571 = vmatprep.subr.mxu0 0.0
        %572 = vmatpush1.msra.mxu0 %v454
        %573 = vmatprep.subr.mxu0 0.0
        %574 = vmatpush1.msra.mxu0 %v455
        %575 = vmatprep.subr.mxu0 0.0
        %576 = vmatpush1.msra.mxu0 %v456
        %577 = vmatprep.subr.mxu0 0.0
        %578 = vmatpush1.msra.mxu0 %v457
        %579 = vmatprep.subr.mxu0 0.0
        %580 = vmatpush1.msra.mxu0 %v458
        %581 = vmatprep.subr.mxu0 0.0
        %582 = vmatpush1.msra.mxu0 %v459
        %583 = vmatprep.subr.mxu0 0.0
        %584 = vmatpush1.msra.mxu0 %v460
        %585 = vmatprep.subr.mxu0 0.0
        %586 = vmatpush1.msra.mxu0 %v461
        %587 = vmatprep.subr.mxu0 0.0
        %588 = vmatpush1.msra.mxu0 %v462
        %589 = vmatprep.subr.mxu0 0.0
        %590 = vmatpush1.msra.mxu0 %v463
        %591 = vmatprep.subr.mxu0 0.0
        %592 = vmatpush1.msra.mxu0 %v464
        %593 = vmatprep.subr.mxu0 0.0
        %594 = vmatpush1.msra.mxu0 %v465
        %595 = vmatprep.subr.mxu0 0.0
        %596 = vmatpush1.msra.mxu0 %v466
        %597 = vmatprep.subr.mxu0 0.0
        %598 = vmatpush1.msra.mxu0 %v467
        %599 = vmatprep.subr.mxu0 0.0
        %600 = vmatpush1.msra.mxu0 %v468
        %601 = vmatprep.subr.mxu0 0.0
        %602 = vmatpush1.msra.mxu0 %v469
        %603 = vmatprep.subr.mxu0 0.0
        %604 = vmatpush1.msra.mxu0 %v470
        %605 = vmatprep.subr.mxu0 0.0
        %606 = vmatpush1.msra.mxu0 %v471
        %607 = vmatprep.subr.mxu0 0.0
        %608 = vmatpush1.msra.mxu0 %v472
        %609 = vmatprep.subr.mxu0 0.0
        %610 = vmatpush1.msra.mxu0 %v473
        %611 = vmatprep.subr.mxu0 0.0
        %612 = vmatpush1.msra.mxu0 %v474
        %613 = vmatprep.subr.mxu0 0.0
        %614 = vmatpush1.msra.mxu0 %v475
        %615 = vmatprep.subr.mxu0 0.0
        %616 = vmatpush1.msra.mxu0 %v476
        %617 = vmatprep.subr.mxu0 0.0
        %618 = vmatpush1.msra.mxu0 %v477
        %619 = vmatprep.subr.mxu0 0.0
        %620 = vmatpush1.msra.mxu0 %v478
        %621 = vmatprep.subr.mxu0 0.0
        %622 = vmatpush1.msra.mxu0 %v479
        %623 = vmatprep.subr.mxu0 0.0
        %624 = vmatpush1.msra.mxu0 %v480
        %625 = vmatprep.subr.mxu0 0.0
        %626 = vmatpush1.msra.mxu0 %v481
        %627 = vmatprep.subr.mxu0 0.0
        %628 = vmatpush1.msra.mxu0 %v482
        %629 = vmatprep.subr.mxu0 0.0
        %630 = vmatpush1.msra.mxu0 %v483
        %631 = vmatprep.subr.mxu0 0.0
        %632 = vmatpush1.msra.mxu0 %v484
        %633 = vmatprep.mubr.f32.mxu0 %v420
        %634 = vmatmul.mubr.f32.gmra.mrb[0].mxu0 %v419
        %v635 = vpop.f32.mrb[0].mxu0
        %v636 = vadd.f32 %v567, %v635
        %v637 = vpop.f32.mrb[0].mxu0
        %638 = vdwg.mxu0
        %639 = vst [vmem:[%s388] sm:$0xff] %v559
        %640 = vst [vmem:[%s395] sm:$0xff] %v636
        %s641 = sand.u32 %s185, 1
        %s642 = scalar_lea.sflag [#allocation4], %s641
        %s643 = sand.u32 %s185, 1
        %s644 = smul.addr %s643, 8
        %s645 = scalar_lea.vmem [#allocation9], %s644
        %s646 = sand.u32 %s211, 1
        %s647 = scalar_lea.sflag [#allocation11], %s646
        %s648 = sand.u32 %s211, 1
        %s649 = smul.addr %s648, 8
        %s650 = scalar_lea.vmem [#allocation10], %s649
        // Predicated region
        $region61: #{tpu_custom_call.1} parent=43 // pred_check
          %p651 = pneg %p195
        $region62: #{tpu_custom_call.1} parent=43 // pred_check_branch
          %653 = sbr.rel (%p651) target = $region64
        $region63: #{tpu_custom_call.1} parent=43 // pred_region
          %s655 = ssub.s32 128, 128
          %656 = vsyncadd %s642, %s655
          %s657 = smul.addr %s27, 128
          %s658 = scalar_lea.hbm %s6, %s657
          %s660 = sshll.u32 %s645, 4
          %s661 = int_to_ptr.vmem [resolvable:$true] %s660
          %663 = dma.vmem_to_hbm [thread:$0]  %s661, 128, %s658, %s642
        $region64: #{tpu_custom_call.1} parent=43 // pred_fallthru
          _
        // Predicated region
        $region65: #{tpu_custom_call.1} parent=43 // pred_check
          %p664 = pneg %p221
        $region66: #{tpu_custom_call.1} parent=43 // pred_check_branch
          %666 = sbr.rel (%p664) target = $region68
        $region67: #{tpu_custom_call.1} parent=43 // pred_region
          %s668 = ssub.s32 128, 128
          %669 = vsyncadd %s647, %s668
          %s670 = smul.addr %s27, 128
          %s671 = scalar_lea.hbm %s7, %s670
          %s673 = sshll.u32 %s650, 4
          %s674 = int_to_ptr.vmem [resolvable:$true] %s673
          %676 = dma.vmem_to_hbm [thread:$0]  %s674, 128, %s671, %s647
        $region68: #{tpu_custom_call.1} parent=43 // pred_fallthru
          _
      $region44: #{tpu_custom_call.1} parent=5 // pred_fallthru
        _
      %p677 = scmp.le.s32.totalorder 2, %s22
      // Predicated region
      $region69: #{tpu_custom_call.1} parent=5 // pred_check
        %p678 = pneg %p677
      $region70: #{tpu_custom_call.1} parent=5 // pred_check_branch
        %680 = sbr.rel (%p678) target = $region72
      $region71: #{tpu_custom_call.1} parent=5 // pred_region
        %s681 = ssub.s32 %s22, 2
        // Predicated region
        $region73: #{tpu_custom_call.1} parent=71 // pred_check
          %p682 = pneg %p201
        $region74: #{tpu_custom_call.1} parent=71 // pred_check_branch
          %684 = sbr.rel (%p682) target = $region76
        $region75: #{tpu_custom_call.1} parent=71 // pred_region
          %s685 = sand.u32 %s186, 1
          %s686 = scalar_lea.sflag [#allocation4], %s685
          %s687 = sand.u32 %s186, 1
          %s688 = smul.addr %s687, 8
          %s689 = scalar_lea.vmem [#allocation9], %s688
          %690 = dma.done %s686, 128
        $region76: #{tpu_custom_call.1} parent=71 // pred_fallthru
          _
        // Predicated region
        $region77: #{tpu_custom_call.1} parent=71 // pred_check
          %p691 = pneg %p227
        $region78: #{tpu_custom_call.1} parent=71 // pred_check_branch
          %693 = sbr.rel (%p691) target = $region80
        $region79: #{tpu_custom_call.1} parent=71 // pred_region
          %s694 = sand.u32 %s212, 1
          %s695 = scalar_lea.sflag [#allocation11], %s694
          %s696 = sand.u32 %s212, 1
          %s697 = smul.addr %s696, 8
          %s698 = scalar_lea.vmem [#allocation10], %s697
          %699 = dma.done %s695, 128
        $region80: #{tpu_custom_call.1} parent=71 // pred_fallthru
          _
      $region72: #{tpu_custom_call.1} parent=5 // pred_fallthru
        _
    $region6: #{tpu_custom_call.1} parent=1 // loop_footer
      %s26 = sadd.s32 1, %s22
    $region7: #{tpu_custom_call.1} parent=1 // loop_footer_branch
      %21 = sbr.rel target = $region3
    $region8: #{tpu_custom_call.1} parent=1 // loop_exit
      _
    %700 = vsyncpa [#allocation3], 1
    %s701 = scalar_lea.sflag [#allocation3], 1
    %702 = vsyncpa %s701, 1
    %703 = vsyncpa [#allocation6], 1
    %704 = vsyncpa [#allocation4], 1
    %s705 = scalar_lea.sflag [#allocation4], 1
    %706 = vsyncpa %s705, 1
    %707 = vsyncpa [#allocation11], 1
    %s708 = scalar_lea.sflag [#allocation11], 1
    %709 = vsyncpa %s708, 1

</llo_original>
